<compile_context>
chip_gen: v6e
topology: v6e:2x2x1
jax: 0.10.0
libtpu: 0.0.40
codegen_flags: <defaults>
</compile_context>

<pallas_src>
import functools

import jax
import jax.numpy as jnp
from jax.experimental import pallas as pl
from jax.experimental.pallas import tpu as pltpu


_TARGET_BLOCK_ELEMS = 512 * 1024        # ~2 MiB f32 per block
_FAST_DENSE_BYTES = 2 * 1024 * 1024     # fast path if lane-dense and <= 2 MiB
_FAST_RAGGED_ELEMS = 64 * 1024          # fast path cap for non-128-divisible n


# ---------------------------------------------------------------------------
# Fast path: whole tensor in one VMEM block (read once, normalize in place).
# ---------------------------------------------------------------------------
def _fused_kernel(x_ref, o_ref):
    x = x_ref[...].astype(jnp.float32)
    mn = jnp.min(x)
    mx = jnp.max(x)
    o_ref[...] = ((x - mn) / (mx - mn)).astype(o_ref.dtype)


# ---------------------------------------------------------------------------
# Tiled path, pass 1: global (min, max) into a resident SMEM output.
# ---------------------------------------------------------------------------
def _minmax_kernel(x_ref, mm_ref, *, rows_total, block_rows, ragged):
    t = pl.program_id(0)

    @pl.when(t == 0)
    def _init():
        mm_ref[0] = jnp.float32(jnp.inf)    # running min
        mm_ref[1] = jnp.float32(-jnp.inf)   # running max

    x = x_ref[...].astype(jnp.float32)

    def _update(xmin_src, xmax_src):
        mm_ref[0] = jnp.minimum(mm_ref[0], jnp.min(xmin_src))
        mm_ref[1] = jnp.maximum(mm_ref[1], jnp.max(xmax_src))

    if ragged:
        last = pl.num_programs(0) - 1

        @pl.when(t != last)
        def _full():
            _update(x, x)

        @pl.when(t == last)
        def _partial():
            # Mask rows past the end of the array (overhanging block reads
            # return garbage) with +/- inf so they never win the reduction.
            row = jax.lax.broadcasted_iota(jnp.int32, x.shape, 0) + t * block_rows
            valid = row < rows_total
            _update(jnp.where(valid, x, jnp.inf),
                    jnp.where(valid, x, -jnp.inf))
    else:
        _update(x, x)


# ---------------------------------------------------------------------------
# Tiled path, pass 2: out = (x - min) * inv  (inv precomputed once).
# ---------------------------------------------------------------------------
def _normalize_kernel(params_ref, x_ref, o_ref):
    mn = params_ref[0]
    inv = params_ref[1]
    x = x_ref[...].astype(jnp.float32)
    o_ref[...] = ((x - mn) * inv).astype(o_ref.dtype)


def norm_layer(inp):
    """Pallas implementation of NormLayer.forward: (x - min) / (max - min)."""
    orig_shape = inp.shape
    dtype = inp.dtype
    n = inp.size
    nbytes = n * jnp.dtype(dtype).itemsize

    # ---------------- fast path: single VMEM block ----------------
    x2 = None
    if n % 128 == 0 and nbytes <= _FAST_DENSE_BYTES:
        x2 = inp.reshape(n // 128, 128)          # lane-dense, free reshape
    elif n % 128 != 0 and n <= _FAST_RAGGED_ELEMS:
        x2 = inp.reshape(1, n)                   # small, vreg-padded is fine

    if x2 is not None:
        out2 = pl.pallas_call(
            _fused_kernel,
            out_shape=jax.ShapeDtypeStruct(x2.shape, dtype),
        )(x2)
        return out2.reshape(orig_shape)

    # ---------------- tiled two-pass path ----------------
    flat = inp.reshape(-1)
    if n % 128 != 0:
        # TODO(synk): rare ragged-size fallback pads with a real element (one
        # extra XLA copy); typical NCHW sizes are 128-divisible and skip this.
        pad = (-n) % 128
        flat = jnp.concatenate([flat, jnp.broadcast_to(flat[0], (pad,))])
    m = flat.shape[0]

    for lanes in (1024, 512, 256, 128):          # widest lane count that divides
        if m % lanes == 0:
            break
    rows = m // lanes
    block_rows = max(8, _TARGET_BLOCK_ELEMS // lanes)   # ~2 MiB f32 blocks
    num_tiles = (rows + block_rows - 1) // block_rows
    ragged = (rows % block_rows) != 0
    x2 = flat.reshape(rows, lanes)

    # Pass 1: global min/max; SMEM output stays resident across the grid, so
    # there is no per-tile output writeback (tensor is read once, 8 B written).
    stats = pl.pallas_call(
        functools.partial(_minmax_kernel, rows_total=rows,
                          block_rows=block_rows, ragged=ragged),
        out_shape=jax.ShapeDtypeStruct((2,), jnp.float32),
        grid_spec=pltpu.PrefetchScalarGridSpec(
            num_scalar_prefetch=0,
            grid=(num_tiles,),
            in_specs=[pl.BlockSpec((block_rows, lanes), lambda t: (t, 0))],
            out_specs=pl.BlockSpec(memory_space=pltpu.MemorySpace.SMEM),
        ),
        compiler_params=pltpu.CompilerParams(
            dimension_semantics=("arbitrary",)),
    )(x2)

    # Hoist the divide out of the per-element path: one scalar reciprocal.
    mn = stats[0]
    inv = 1.0 / (stats[1] - mn)
    params = jnp.stack([mn, inv]).astype(jnp.float32)

    # Pass 2: elementwise normalization; independent tiles -> "parallel"
    # (sharded across both TensorCores on v7x; no-op on v5e/v6e).
    out2 = pl.pallas_call(
        _normalize_kernel,
        out_shape=jax.ShapeDtypeStruct((rows, lanes), dtype),
        grid_spec=pltpu.PrefetchScalarGridSpec(
            num_scalar_prefetch=0,
            grid=(num_tiles,),
            in_specs=[pl.BlockSpec(memory_space=pltpu.MemorySpace.SMEM),
                      pl.BlockSpec((block_rows, lanes), lambda t: (t, 0))],
            out_specs=pl.BlockSpec((block_rows, lanes), lambda t: (t, 0)),
        ),
        compiler_params=pltpu.CompilerParams(
            dimension_semantics=("parallel",)),
    )(params, x2)

    out_flat = out2.reshape(-1)
    if m != n:
        out_flat = out_flat[:n]
    return out_flat.reshape(orig_shape)


if __name__ == "__main__":
    key = jax.random.PRNGKey(0)
    k1, k2 = jax.random.split(key)

    # Small NCHW input (exercises the fused single-block fast path).
    x = jax.random.normal(k1, (2, 4, 16, 16), dtype=jnp.float32)
    out = jax.block_until_ready(norm_layer(x))
    mn = jnp.min(x)
    ref = (x - mn) / (jnp.max(x) - mn)
    assert out.shape == x.shape and out.dtype == x.dtype
    assert jnp.allclose(out, ref, atol=1e-6, rtol=1e-6)

    # Larger input (exercises the tiled two-kernel path, incl. ragged last tile).
    x_big = jax.random.normal(k2, (6, 137, 32, 32), dtype=jnp.float32)
    out_big = jax.block_until_ready(norm_layer(x_big))
    mn_b = jnp.min(x_big)
    ref_big = (x_big - mn_b) / (jnp.max(x_big) - mn_b)
    assert out_big.shape == x_big.shape and out_big.dtype == x_big.dtype
    assert jnp.allclose(out_big, ref_big, atol=1e-6, rtol=1e-6)

    print("KERNEL_OK")
</pallas_src>

<mosaic_0001>
module attributes {stable_mosaic.version = 11 : i64} {
  func.func @_fused_kernel(%arg0: memref<16x128xf32, #tpu.memory_space<vmem>>, %arg1: memref<16x128xf32, #tpu.memory_space<vmem>>) attributes {dimension_semantics = [], scalar_prefetch = 0 : i64, scratch_operands = 0 : i64, tpu.core_type = #tpu.core_type<tc>} {
    %c0 = arith.constant 0 : index
    %c0_0 = arith.constant 0 : index
    %0 = vector.load %arg0[%c0, %c0_0] : memref<16x128xf32, #tpu.memory_space<vmem>>, vector<16x128xf32>
    %1 = vector.shape_cast %0 : vector<16x128xf32> to vector<1x16x128xf32>
    %cst = arith.constant dense<0x7F800000> : vector<1xf32>
    %2 = vector.multi_reduction <minimumf>, %1, %cst [1, 2] : vector<1x16x128xf32> to vector<1xf32>
    %3 = vector.shape_cast %2 : vector<1xf32> to vector<1x1x1xf32>
    %4 = vector.extract %3[0, 0, 0] : f32 from vector<1x1x1xf32>
    %5 = vector.shape_cast %0 : vector<16x128xf32> to vector<1x16x128xf32>
    %cst_1 = arith.constant dense<0xFF800000> : vector<1xf32>
    %6 = vector.multi_reduction <maximumf>, %5, %cst_1 [1, 2] : vector<1x16x128xf32> to vector<1xf32>
    %7 = vector.shape_cast %6 : vector<1xf32> to vector<1x1x1xf32>
    %8 = vector.extract %7[0, 0, 0] : f32 from vector<1x1x1xf32>
    %9 = vector.broadcast %4 : f32 to vector<16x128xf32>
    %10 = arith.subf %0, %9 : vector<16x128xf32>
    %11 = arith.subf %8, %4 : f32
    %12 = vector.broadcast %11 : f32 to vector<16x128xf32>
    %13 = arith.divf %10, %12 : vector<16x128xf32>
    %c0_2 = arith.constant 0 : index
    %c0_3 = arith.constant 0 : index
    %14 = vector.load %arg1[%c0_2, %c0_3] : memref<16x128xf32, #tpu.memory_space<vmem>>, vector<16x128xf32>
    tpu.vector_store %arg1[%c0_2, %c0_3], %13 {strides = array<i32>} : memref<16x128xf32, #tpu.memory_space<vmem>>, vector<16x128xf32>,
    return
  }
}

</mosaic_0001>

<llo_original>
// kernel: tpu_custom_call.1
$region0: #{tpu_custom_call.1}
  #allocation0 [shape = 'u32[]', space=smem, size = 0x4, offset = 0x4, fixed_abs, tag = 'smem constant byte address 0x4 - core index']
  #allocation1 [shape = 'u32[144,128]{1,0:T(1,128)}', space=vmem, size = 0x12000, scoped, tag = 'internal scratch']
  %s0 = inlined_call_operand.hbm [shape: f32[16,128], index: 0, kind: input, shape index: {}]
  %s1 = inlined_call_operand.hbm [shape: f32[16,128], index: 1, kind: output, shape index: {}]
  %s2 = sld [smem:[#allocation0]]
  $region18: #{tpu_custom_call.1} parent=0
    _
  %s4 = ssub.s32 1, %s2
  %s5 = scalar_select 0, %s4, %s2
  $region1: #{tpu_custom_call.1} parent=0
    #allocation2 [shape = 'u8[8192]{0}', space=vmem, size = 0x2000, scoped, tag = 'input window, operand 0, single buffered']
    #allocation3 [shape = 's32[1]{0}', space=sflag, size = 0x4, scoped, tag = 'scoped memory for tpu_custom_call.1']
    #allocation4 [shape = 's32[1]{0}', space=sflag, size = 0x4, scoped, tag = 'scoped memory for tpu_custom_call.1']
    #allocation5 [shape = 'u8[8192]{0}', space=vmem, size = 0x2000, scoped, tag = 'output window, operand 0, single buffered']
    %6 = vsyncpa [#allocation3], 0
    %7 = vsyncpa [#allocation4], 0
    // Predicated region
    $region2: #{tpu_custom_call.1} parent=1 // pred_check
      _
    $region3: #{tpu_custom_call.1} parent=1 // pred_check_branch
      %9 = sbr.rel (0) target = $region5
    $region4: #{tpu_custom_call.1} parent=1 // pred_region
      %s11 = ssub.s32 256, 256
      %12 = vsyncadd [#allocation3], %s11
      %s13 = sshll.u32 [#allocation2], 4
      %s14 = int_to_ptr.vmem [resolvable:$true] %s13
      %19 = dma.hbm_to_vmem [thread:$0]  %s0, 256, %s14, [#allocation3], 128, 128, 8
    $region5: #{tpu_custom_call.1} parent=1 // pred_fallthru
      _
    // Predicated region
    $region6: #{tpu_custom_call.1} parent=1 // pred_check
      _
    $region7: #{tpu_custom_call.1} parent=1 // pred_check_branch
      %21 = sbr.rel (0) target = $region9
    $region8: #{tpu_custom_call.1} parent=1 // pred_region
      %22 = dma.done [#allocation3], 256
    $region9: #{tpu_custom_call.1} parent=1 // pred_fallthru
      _
    %v23 = vld [vmem:[#allocation2] sm:$0xff]
    %v24 = vld [vmem:[#allocation2 + $0x8] sm:$0xff]
    %v25 = vmin.f32 %v23, %v24
    %26 = vmin.xlane.f32.xlu0 %v25
    %v27 = vpop.xlane.xlu0 %26
    %v28 = vrot.slane %v27, 4
    %v29 = vmin.f32 %v27, %v28
    %v30 = vrot.slane %v29, 2
    %v31 = vmin.f32 %v29, %v30
    %v32 = vrot.slane %v31, 1
    %v33 = vmin.f32 %v31, %v32
    %s34 = vtos %v33
    %v35 = vmax.f32 %v23, %v24
    %36 = vmax.xlane.f32.xlu0 %v35
    %v37 = vpop.xlane.xlu0 %36
    %v38 = vrot.slane %v37, 4
    %v39 = vmax.f32 %v37, %v38
    %v40 = vrot.slane %v39, 2
    %v41 = vmax.f32 %v39, %v40
    %v42 = vrot.slane %v41, 1
    %v43 = vmax.f32 %v41, %v42
    %s44 = vtos %v43
    %v45 = vstv %s34
    %v46 = vsub.f32 %v23, %v45
    %v47 = vsub.f32 %v24, %v45
    %s48 = ssub.f32 %s44, %s34
    %v49 = vstv %s48
    %v50 = vrcp.pop %v49
    %v51 = vmul.f32 %v46, %v50
    %v52 = vmul.f32 %v47, %v50
    %53 = vst [vmem:[#allocation5] sm:$0xff] %v51
    %54 = vst [vmem:[#allocation5 + $0x8] sm:$0xff] %v52
    // Predicated region
    $region10: #{tpu_custom_call.1} parent=1 // pred_check
      _
    $region11: #{tpu_custom_call.1} parent=1 // pred_check_branch
      %56 = sbr.rel (0) target = $region13
    $region12: #{tpu_custom_call.1} parent=1 // pred_region
      %s58 = ssub.s32 256, 256
      %59 = vsyncadd [#allocation4], %s58
      %s60 = sshll.u32 [#allocation5], 4
      %s61 = int_to_ptr.vmem [resolvable:$true] %s60
      %66 = dma.vmem_to_hbm [thread:$0]  %s61, 256, %s1, [#allocation4], 128, 128, 8
    $region13: #{tpu_custom_call.1} parent=1 // pred_fallthru
      _
    // Predicated region
    $region14: #{tpu_custom_call.1} parent=1 // pred_check
      _
    $region15: #{tpu_custom_call.1} parent=1 // pred_check_branch
      %68 = sbr.rel (0) target = $region17
    $region16: #{tpu_custom_call.1} parent=1 // pred_region
      %69 = dma.done [#allocation4], 256
    $region17: #{tpu_custom_call.1} parent=1 // pred_fallthru
      _
    %70 = vsyncpa [#allocation3], 1
    %71 = vsyncpa [#allocation4], 1

</llo_original>
